<compile_context>
chip_gen: v7x
topology: tpu7x:2x2x1
jax: 0.10.0
libtpu: 0.0.40
codegen_flags: <defaults>
</compile_context>

<pallas_src>
import jax
import jax.numpy as jnp
from jax.experimental import pallas as pl
from jax.experimental.pallas import tpu as pltpu

LANE = 128      # TPU lane width
SUBLANE = 8

# Single-block (grid-free) path only for genuinely small batches; sized well
# below v7x's 32 MiB scoped-VMEM default (1024 rows of f32 x at F=32 ~ 128 KiB).
SINGLE_BLOCK_MAX_ROWS = 1024


def _round_up(n, m):
    return ((n + m - 1) // m) * m


def mlp_kernel(x_ref, w1_ref, b1_ref, w2_ref, b2_ref, o_ref):
    # Linear -> ReLU -> Linear -> ReLU, all operands already in VMEM.
    x = x_ref[...]
    h = jnp.dot(x, w1_ref[...], preferred_element_type=jnp.float32) + b1_ref[...]
    h = jnp.maximum(h, 0.0)
    y = jnp.dot(h, w2_ref[...], preferred_element_type=jnp.float32)
    o = o_ref.shape[-1]                       # 2 valid output features
    y = y[:, :o] + b2_ref[...]                # drop padded MXU columns before store
    o_ref[...] = jnp.maximum(y, 0.0).astype(o_ref.dtype)


def prepare_params(w1, b1, w2, b2):
    """One-time padding/cast of parameters (hoisted out of the per-step forward).

    Hidden dim (10) and the second matmul's N dim are zero-padded to the 128
    lane width once; padding is exact under ReLU (padded hidden cols are
    ReLU(0)=0 and hit zero rows of w2p; padded output cols are never stored).
    """
    F, H = w1.shape
    O = w2.shape[1]
    Hp = _round_up(H, LANE)
    Op = _round_up(O, LANE)
    w1p = jnp.pad(w1.astype(jnp.float32), ((0, 0), (0, Hp - H)))
    b1p = jnp.pad(b1.astype(jnp.float32).reshape(1, H), ((0, 0), (0, Hp - H)))
    w2p = jnp.pad(w2.astype(jnp.float32), ((0, Hp - H), (0, Op - O)))
    b2p = b2.astype(jnp.float32).reshape(1, O)          # unpadded; added post-slice
    return w1p, b1p, w2p, b2p


def net_forward(x, params, *, tile_b=2048):
    """Pallas equivalent of Net.forward: flatten then 2-layer MLP with ReLU."""
    w1p, b1p, w2p, b2p = params
    B = x.shape[0]
    x2d = x.reshape(B, -1).astype(jnp.float32)          # x.view(x.size(0), -1)
    F = x2d.shape[1]
    O = b2p.shape[-1]

    cost = pl.CostEstimate(
        flops=2 * B * F * w1p.shape[1] + 2 * B * w2p.shape[0] * w2p.shape[1],
        transcendentals=0,
        bytes_accessed=4 * (x2d.size + w1p.size + b1p.size + w2p.size
                            + b2p.size + B * O),
    )
    out_shape = jax.ShapeDtypeStruct((B, O), jnp.float32)

    if B <= min(tile_b, SINGLE_BLOCK_MAX_ROWS):
        # Tiny batch: whole problem is one VMEM-resident block, no grid /
        # pipeline bookkeeping, no padding, output written exactly as (B, 2).
        return pl.pallas_call(
            mlp_kernel,
            out_shape=out_shape,
            in_specs=[pl.BlockSpec(memory_space=pltpu.MemorySpace.VMEM)] * 5,
            out_specs=pl.BlockSpec(memory_space=pltpu.MemorySpace.VMEM),
            cost_estimate=cost,
        )(x2d, w1p, b1p, w2p, b2p)

    # Tiled path: grid over the batch axis only ("parallel" -> v7x 2-TC
    # sharding).  Weights/biases are whole-array VMEM residents (DMA'd once).
    # No batch padding: the ragged last block is handled by Pallas (OOB input
    # rows are garbage but their output rows are bounds-masked on store).
    grid = pl.cdiv(B, tile_b)
    if grid > 1 and grid % 2 == 1:
        # Keep the grid even so both v7x TensorCores get balanced work.
        grid += 1
        tile_b = _round_up(pl.cdiv(B, grid), SUBLANE)
        grid = pl.cdiv(B, tile_b)

    return pl.pallas_call(
        mlp_kernel,
        out_shape=out_shape,
        grid=(grid,),
        in_specs=[
            pl.BlockSpec((tile_b, F), lambda i: (i, 0)),
            pl.BlockSpec(memory_space=pltpu.MemorySpace.VMEM),   # w1p (resident)
            pl.BlockSpec(memory_space=pltpu.MemorySpace.VMEM),   # b1p
            pl.BlockSpec(memory_space=pltpu.MemorySpace.VMEM),   # w2p
            pl.BlockSpec(memory_space=pltpu.MemorySpace.VMEM),   # b2p
        ],
        out_specs=pl.BlockSpec((tile_b, O), lambda i: (i, 0)),
        compiler_params=pltpu.CompilerParams(
            dimension_semantics=("parallel",)),
        cost_estimate=cost,
    )(x2d, w1p, b1p, w2p, b2p)


def init_params(key, attr_count, hidden=10, out=2):
    """Deterministic init mirroring nn.Linear's U(-1/sqrt(fan_in), 1/sqrt(fan_in))."""
    k1, k2, k3, k4 = jax.random.split(key, 4)
    bound1 = 1.0 / jnp.sqrt(attr_count)
    bound2 = 1.0 / jnp.sqrt(hidden)
    w1 = jax.random.uniform(k1, (attr_count, hidden), jnp.float32, -bound1, bound1)
    b1 = jax.random.uniform(k2, (hidden,), jnp.float32, -bound1, bound1)
    w2 = jax.random.uniform(k3, (hidden, out), jnp.float32, -bound2, bound2)
    b2 = jax.random.uniform(k4, (out,), jnp.float32, -bound2, bound2)
    return w1, b1, w2, b2


if __name__ == "__main__":
    key = jax.random.PRNGKey(0)
    k_x, k_p, k_x2 = jax.random.split(key, 3)

    attr_count, hidden, out_dim = 32, 10, 2
    w1, b1, w2, b2 = init_params(k_p, attr_count, hidden, out_dim)
    params = prepare_params(w1, b1, w2, b2)   # one-time prep, reused every call

    def ref_fwd(xa):
        x2 = xa.reshape(xa.shape[0], -1)
        return jnp.maximum(jnp.maximum(x2 @ w1 + b1, 0.0) @ w2 + b2, 0.0)

    # Small-batch path (single VMEM block, no grid, no padding anywhere).
    x_small = jax.random.normal(k_x, (8, attr_count), jnp.float32)
    y_small = jax.block_until_ready(net_forward(x_small, params))
    assert y_small.shape == (8, out_dim)
    assert jnp.allclose(y_small, ref_fwd(x_small), atol=1e-5, rtol=1e-5)

    # Tiled path: ragged batch, grid bumped to an even length (300 @ tile 128
    # -> 4 tiles of 80 rows), batch axis parallel, exact (B,2) output.
    x_big = jax.random.normal(k_x2, (300, attr_count), jnp.float32)
    y_big = jax.block_until_ready(net_forward(x_big, params, tile_b=128))
    assert y_big.shape == (300, out_dim)
    assert jnp.allclose(y_big, ref_fwd(x_big), atol=1e-5, rtol=1e-5)

    print("KERNEL_OK")
</pallas_src>

<mosaic_0001>
module attributes {stable_mosaic.version = 11 : i64} {
  func.func @mlp_kernel(%arg0: memref<8x32xf32, #tpu.memory_space<vmem>>, %arg1: memref<32x128xf32, #tpu.memory_space<vmem>>, %arg2: memref<1x128xf32, #tpu.memory_space<vmem>>, %arg3: memref<128x128xf32, #tpu.memory_space<vmem>>, %arg4: memref<1x2xf32, #tpu.memory_space<vmem>>, %arg5: memref<8x2xf32, #tpu.memory_space<vmem>>) attributes {dimension_semantics = [], scalar_prefetch = 0 : i64, scratch_operands = 0 : i64, tpu.core_type = #tpu.core_type<tc>} {
    %c0 = arith.constant 0 : index
    %c0_0 = arith.constant 0 : index
    %0 = vector.load %arg0[%c0, %c0_0] : memref<8x32xf32, #tpu.memory_space<vmem>>, vector<8x32xf32>
    %c0_1 = arith.constant 0 : index
    %c0_2 = arith.constant 0 : index
    %1 = vector.load %arg1[%c0_1, %c0_2] : memref<32x128xf32, #tpu.memory_space<vmem>>, vector<32x128xf32>
    %cst = arith.constant dense<0.000000e+00> : vector<8x128xf32>
    %2 = tpu.matmul %0, %1, %cst {dimension_numbers = #tpu.dot_dimension_numbers<[1], [0], [0], [1], [0, 0, 1, 1], [], []>} : vector<8x32xf32>, vector<32x128xf32>, vector<8x128xf32> -> vector<8x128xf32>
    %c0_3 = arith.constant 0 : index
    %c0_4 = arith.constant 0 : index
    %3 = vector.load %arg2[%c0_3, %c0_4] : memref<1x128xf32, #tpu.memory_space<vmem>>, vector<1x128xf32>
    %4 = vector.broadcast %3 : vector<1x128xf32> to vector<8x128xf32>
    %5 = arith.addf %2, %4 : vector<8x128xf32>
    %cst_5 = arith.constant 0.000000e+00 : f32
    %6 = vector.broadcast %cst_5 : f32 to vector<8x128xf32>
    %7 = arith.maximumf %5, %6 : vector<8x128xf32>
    %c0_6 = arith.constant 0 : index
    %c0_7 = arith.constant 0 : index
    %8 = vector.load %arg3[%c0_6, %c0_7] : memref<128x128xf32, #tpu.memory_space<vmem>>, vector<128x128xf32>
    %cst_8 = arith.constant dense<0.000000e+00> : vector<8x128xf32>
    %9 = tpu.matmul %7, %8, %cst_8 {dimension_numbers = #tpu.dot_dimension_numbers<[1], [0], [0], [1], [0, 0, 1, 1], [], []>} : vector<8x128xf32>, vector<128x128xf32>, vector<8x128xf32> -> vector<8x128xf32>
    %10 = vector.extract_strided_slice %9 {offsets = [0, 0], sizes = [8, 2], strides = [1, 1]} : vector<8x128xf32> to vector<8x2xf32>
    %c0_9 = arith.constant 0 : index
    %c0_10 = arith.constant 0 : index
    %11 = vector.load %arg4[%c0_9, %c0_10] : memref<1x2xf32, #tpu.memory_space<vmem>>, vector<1x2xf32>
    %12 = vector.broadcast %11 : vector<1x2xf32> to vector<8x2xf32>
    %13 = arith.addf %10, %12 : vector<8x2xf32>
    %cst_11 = arith.constant 0.000000e+00 : f32
    %14 = vector.broadcast %cst_11 : f32 to vector<8x2xf32>
    %15 = arith.maximumf %13, %14 : vector<8x2xf32>
    %c0_12 = arith.constant 0 : index
    %c0_13 = arith.constant 0 : index
    %16 = vector.load %arg5[%c0_12, %c0_13] : memref<8x2xf32, #tpu.memory_space<vmem>>, vector<8x2xf32>
    tpu.vector_store %arg5[%c0_12, %c0_13], %15 {strides = array<i32>} : memref<8x2xf32, #tpu.memory_space<vmem>>, vector<8x2xf32>,
    return
  }
}

</mosaic_0001>

<llo_original>
// kernel: tpu_custom_call.1
$region0: #{tpu_custom_call.1}
  #allocation0 [shape = 'u32[]', space=smem, size = 0x4, offset = 0x4, fixed_abs, tag = 'smem constant byte address 0x4 - core index']
  #allocation1 [shape = 'u32[144,128]{1,0:T(1,128)}', space=vmem, size = 0x12000, scoped, tag = 'internal scratch']
  %s0 = inlined_call_operand.hbm [shape: f32[8,32], index: 0, kind: input, shape index: {}]
  %s1 = inlined_call_operand.hbm [shape: f32[32,128], index: 1, kind: input, shape index: {}]
  %s2 = inlined_call_operand.vmem [shape: f32[1,128], index: 2, kind: input, shape index: {}]
  %s3 = inlined_call_operand.hbm [shape: f32[128,128], index: 3, kind: input, shape index: {}]
  %s4 = inlined_call_operand.vmem [shape: f32[1,2], index: 4, kind: input, shape index: {}]
  %s5 = inlined_call_operand.vmem [shape: f32[8,2], index: 5, kind: output, shape index: {}]
  %s6 = sld [smem:[#allocation0]]
  $region42: #{tpu_custom_call.1} parent=0
    _
  %s8 = ssub.s32 1, %s6
  %s9 = scalar_select 0, %s8, %s6
  $region1: #{tpu_custom_call.1} parent=0
    #allocation2 [shape = 'u8[4096]{0}', space=vmem, size = 0x1000, scoped, tag = 'input window, operand 0, single buffered']
    #allocation3 [shape = 's32[1]{0}', space=sflag, size = 0x4, scoped, tag = 'scoped memory for tpu_custom_call.1']
    #allocation4 [shape = 'u8[16384]{0}', space=vmem, size = 0x4000, scoped, tag = 'input window, operand 1, single buffered']
    #allocation5 [shape = 's32[1]{0}', space=sflag, size = 0x4, scoped, tag = 'scoped memory for tpu_custom_call.1']
    #allocation6 [shape = 'u8[65536]{0}', space=vmem, size = 0x10000, scoped, tag = 'input window, operand 3, single buffered']
    %10 = vsyncpa [#allocation3], 0
    %11 = vsyncpa [#allocation5], 0
    // Predicated region
    $region2: #{tpu_custom_call.1} parent=1 // pred_check
      _
    $region3: #{tpu_custom_call.1} parent=1 // pred_check_branch
      %13 = sbr.rel (0) target = $region5
    $region4: #{tpu_custom_call.1} parent=1 // pred_region
      %s15 = ssub.s32 128, 128
      %16 = vsyncadd [#allocation3], %s15
      %s18 = sshll.u32 [#allocation2], 4
      %s19 = int_to_ptr.vmem [resolvable:$true] %s18
      %21 = dma.hbm_to_vmem [thread:$0]  %s0, 128, %s19, [#allocation3]
    $region5: #{tpu_custom_call.1} parent=1 // pred_fallthru
      _
    // Predicated region
    $region6: #{tpu_custom_call.1} parent=1 // pred_check
      _
    $region7: #{tpu_custom_call.1} parent=1 // pred_check_branch
      %23 = sbr.rel (0) target = $region9
    $region8: #{tpu_custom_call.1} parent=1 // pred_region
      %s25 = ssub.s32 512, 512
      %26 = vsyncadd [#allocation5], %s25
      %s27 = sshll.u32 [#allocation4], 4
      %s28 = int_to_ptr.vmem [resolvable:$true] %s27
      %33 = dma.hbm_to_vmem [thread:$0]  %s1, 512, %s28, [#allocation5], 128, 128, 8
    $region9: #{tpu_custom_call.1} parent=1 // pred_fallthru
      _
    // Predicated region
    $region10: #{tpu_custom_call.1} parent=1 // pred_check
      _
    $region11: #{tpu_custom_call.1} parent=1 // pred_check_branch
      %35 = sbr.rel (0) target = $region13
    $region12: #{tpu_custom_call.1} parent=1 // pred_region
      _
    $region13: #{tpu_custom_call.1} parent=1 // pred_fallthru
      _
    // Predicated region
    $region14: #{tpu_custom_call.1} parent=1 // pred_check
      _
    $region15: #{tpu_custom_call.1} parent=1 // pred_check_branch
      %37 = sbr.rel (0) target = $region17
    $region16: #{tpu_custom_call.1} parent=1 // pred_region
      %s39 = ssub.s32 2048, 2048
      %40 = vsyncadd [#allocation5], %s39
      %s41 = sshll.u32 [#allocation6], 4
      %s42 = int_to_ptr.vmem [resolvable:$true] %s41
      %47 = dma.hbm_to_vmem [thread:$0]  %s3, 2048, %s42, [#allocation5], 128, 128, 8
    $region17: #{tpu_custom_call.1} parent=1 // pred_fallthru
      _
    // Predicated region
    $region18: #{tpu_custom_call.1} parent=1 // pred_check
      _
    $region19: #{tpu_custom_call.1} parent=1 // pred_check_branch
      %49 = sbr.rel (0) target = $region21
    $region20: #{tpu_custom_call.1} parent=1 // pred_region
      _
    $region21: #{tpu_custom_call.1} parent=1 // pred_fallthru
      _
    // Predicated region
    $region22: #{tpu_custom_call.1} parent=1 // pred_check
      _
    $region23: #{tpu_custom_call.1} parent=1 // pred_check_branch
      %51 = sbr.rel (0) target = $region25
    $region24: #{tpu_custom_call.1} parent=1 // pred_region
      %52 = dma.done [#allocation3], 128
    $region25: #{tpu_custom_call.1} parent=1 // pred_fallthru
      _
    // Predicated region
    $region26: #{tpu_custom_call.1} parent=1 // pred_check
      _
    $region27: #{tpu_custom_call.1} parent=1 // pred_check_branch
      %54 = sbr.rel (0) target = $region29
    $region28: #{tpu_custom_call.1} parent=1 // pred_region
      %55 = dma.done [#allocation5], 512
    $region29: #{tpu_custom_call.1} parent=1 // pred_fallthru
      _
    // Predicated region
    $region30: #{tpu_custom_call.1} parent=1 // pred_check
      _
    $region31: #{tpu_custom_call.1} parent=1 // pred_check_branch
      %57 = sbr.rel (0) target = $region33
    $region32: #{tpu_custom_call.1} parent=1 // pred_region
      %58 = dma.done [#allocation5], 2048
    $region33: #{tpu_custom_call.1} parent=1 // pred_fallthru
      _
    %v59 = vld [vmem:[#allocation2] sm:$0xff]
    %v60 = vld [vmem:[#allocation4] sm:$0xff]
    %v61 = vld [vmem:[#allocation4 + $0x8] sm:$0xff]
    %v62 = vld [vmem:[#allocation4 + $0x10] sm:$0xff]
    %v63 = vld [vmem:[#allocation4 + $0x18] sm:$0xff]
    %v64 = vld [vmem:[%s2] sm:$0x1]
    %v66 = vlaneseq
    %v67 = vshrl.u32 %v66, 7
    %v68 = vsub.s32 0, %v67
    %v69 = vrot.slane %v64, %v68
    %vm71 = vcmask 261120
    %v73 = vsel %vm71, %v59, 0
    %75 = vmatprep.subr.mxu0 0.0
    %76 = vmatpush1.msra.mxu0 %v60
    %77 = vmatprep.subr.mxu0 0.0
    %78 = vmatpush1.msra.mxu0 %v61
    %79 = vmatprep.subr.mxu0 0.0
    %80 = vmatpush1.msra.mxu0 %v62
    %81 = vmatprep.subr.mxu0 0.0
    %82 = vmatpush1.msra.mxu0 %v63
    %83 = vmatprep.subr.mxu0 0.0
    %84 = vmatpush1.msra.mxu0 0.0
    %85 = vmatprep.subr.mxu0 0.0
    %86 = vmatpush1.msra.mxu0 0.0
    %87 = vmatprep.subr.mxu0 0.0
    %88 = vmatpush1.msra.mxu0 0.0
    %89 = vmatprep.subr.mxu0 0.0
    %90 = vmatpush1.msra.mxu0 0.0
    %91 = vmatprep.subr.mxu0 0.0
    %92 = vmatpush1.msra.mxu0 0.0
    %93 = vmatprep.subr.mxu0 0.0
    %94 = vmatpush1.msra.mxu0 0.0
    %95 = vmatprep.subr.mxu0 0.0
    %96 = vmatpush1.msra.mxu0 0.0
    %97 = vmatprep.subr.mxu0 0.0
    %98 = vmatpush1.msra.mxu0 0.0
    %99 = vmatprep.subr.mxu0 0.0
    %100 = vmatpush1.msra.mxu0 0.0
    %101 = vmatprep.subr.mxu0 0.0
    %102 = vmatpush1.msra.mxu0 0.0
    %103 = vmatprep.subr.mxu0 0.0
    %104 = vmatpush1.msra.mxu0 0.0
    %105 = vmatprep.subr.mxu0 0.0
    %106 = vmatpush1.msra.mxu0 0.0
    %107 = vmatprep.subr.mxu0 0.0
    %108 = vmatpush1.msra.mxu0 0.0
    %109 = vmatprep.subr.mxu0 0.0
    %110 = vmatpush1.msra.mxu0 0.0
    %111 = vmatprep.subr.mxu0 0.0
    %112 = vmatpush1.msra.mxu0 0.0
    %113 = vmatprep.subr.mxu0 0.0
    %114 = vmatpush1.msra.mxu0 0.0
    %115 = vmatprep.subr.mxu0 0.0
    %116 = vmatpush1.msra.mxu0 0.0
    %117 = vmatprep.subr.mxu0 0.0
    %118 = vmatpush1.msra.mxu0 0.0
    %119 = vmatprep.subr.mxu0 0.0
    %120 = vmatpush1.msra.mxu0 0.0
    %121 = vmatprep.subr.mxu0 0.0
    %122 = vmatpush1.msra.mxu0 0.0
    %123 = vmatprep.subr.mxu0 0.0
    %124 = vmatpush1.msra.mxu0 0.0
    %125 = vmatprep.subr.mxu0 0.0
    %126 = vmatpush1.msra.mxu0 0.0
    %127 = vmatprep.subr.mxu0 0.0
    %128 = vmatpush1.msra.mxu0 0.0
    %129 = vmatprep.subr.mxu0 0.0
    %130 = vmatpush1.msra.mxu0 0.0
    %131 = vmatprep.subr.mxu0 0.0
    %132 = vmatpush1.msra.mxu0 0.0
    %133 = vmatprep.subr.mxu0 0.0
    %134 = vmatpush1.msra.mxu0 0.0
    %135 = vmatprep.subr.mxu0 0.0
    %136 = vmatpush1.msra.mxu0 0.0
    %137 = vmatprep.subr.mxu0 0.0
    %138 = vmatpush1.msra.mxu0 0.0
    %139 = vmatprep.mubr.f32.mxu0 0.0
    %140 = vmatmul.mubr.f32.gmra.mrb[0].mxu0 %v73
    %v141 = vpop.f32.mrb[0].mxu0
    %v142 = vadd.f32 %v69, %v141
    %v143 = vpop.f32.mrb[0].mxu0
    %144 = vdwg.mxu0
    %v145 = vmax.f32 %v142, 0.0
    %v146 = vld [vmem:[#allocation6] sm:$0xff]
    %v147 = vld [vmem:[#allocation6 + $0x8] sm:$0xff]
    %v148 = vld [vmem:[#allocation6 + $0x10] sm:$0xff]
    %v149 = vld [vmem:[#allocation6 + $0x18] sm:$0xff]
    %v150 = vld [vmem:[#allocation6 + $0x20] sm:$0xff]
    %v151 = vld [vmem:[#allocation6 + $0x28] sm:$0xff]
    %v152 = vld [vmem:[#allocation6 + $0x30] sm:$0xff]
    %v153 = vld [vmem:[#allocation6 + $0x38] sm:$0xff]
    %v154 = vld [vmem:[#allocation6 + $0x40] sm:$0xff]
    %v155 = vld [vmem:[#allocation6 + $0x48] sm:$0xff]
    %v156 = vld [vmem:[#allocation6 + $0x50] sm:$0xff]
    %v157 = vld [vmem:[#allocation6 + $0x58] sm:$0xff]
    %v158 = vld [vmem:[#allocation6 + $0x60] sm:$0xff]
    %v159 = vld [vmem:[#allocation6 + $0x68] sm:$0xff]
    %v160 = vld [vmem:[#allocation6 + $0x70] sm:$0xff]
    %v161 = vld [vmem:[#allocation6 + $0x78] sm:$0xff]
    %162 = vmatprep.subr.mxu0 0.0
    %163 = vmatpush1.msra.mxu0 %v146
    %164 = vmatprep.subr.mxu0 0.0
    %165 = vmatpush1.msra.mxu0 %v147
    %166 = vmatprep.subr.mxu0 0.0
    %167 = vmatpush1.msra.mxu0 %v148
    %168 = vmatprep.subr.mxu0 0.0
    %169 = vmatpush1.msra.mxu0 %v149
    %170 = vmatprep.subr.mxu0 0.0
    %171 = vmatpush1.msra.mxu0 %v150
    %172 = vmatprep.subr.mxu0 0.0
    %173 = vmatpush1.msra.mxu0 %v151
    %174 = vmatprep.subr.mxu0 0.0
    %175 = vmatpush1.msra.mxu0 %v152
    %176 = vmatprep.subr.mxu0 0.0
    %177 = vmatpush1.msra.mxu0 %v153
    %178 = vmatprep.subr.mxu0 0.0
    %179 = vmatpush1.msra.mxu0 %v154
    %180 = vmatprep.subr.mxu0 0.0
    %181 = vmatpush1.msra.mxu0 %v155
    %182 = vmatprep.subr.mxu0 0.0
    %183 = vmatpush1.msra.mxu0 %v156
    %184 = vmatprep.subr.mxu0 0.0
    %185 = vmatpush1.msra.mxu0 %v157
    %186 = vmatprep.subr.mxu0 0.0
    %187 = vmatpush1.msra.mxu0 %v158
    %188 = vmatprep.subr.mxu0 0.0
    %189 = vmatpush1.msra.mxu0 %v159
    %190 = vmatprep.subr.mxu0 0.0
    %191 = vmatpush1.msra.mxu0 %v160
    %192 = vmatprep.subr.mxu0 0.0
    %193 = vmatpush1.msra.mxu0 %v161
    %194 = vmatprep.subr.mxu0 0.0
    %195 = vmatpush1.msra.mxu0 0.0
    %196 = vmatprep.subr.mxu0 0.0
    %197 = vmatpush1.msra.mxu0 0.0
    %198 = vmatprep.subr.mxu0 0.0
    %199 = vmatpush1.msra.mxu0 0.0
    %200 = vmatprep.subr.mxu0 0.0
    %201 = vmatpush1.msra.mxu0 0.0
    %202 = vmatprep.subr.mxu0 0.0
    %203 = vmatpush1.msra.mxu0 0.0
    %204 = vmatprep.subr.mxu0 0.0
    %205 = vmatpush1.msra.mxu0 0.0
    %206 = vmatprep.subr.mxu0 0.0
    %207 = vmatpush1.msra.mxu0 0.0
    %208 = vmatprep.subr.mxu0 0.0
    %209 = vmatpush1.msra.mxu0 0.0
    %210 = vmatprep.subr.mxu0 0.0
    %211 = vmatpush1.msra.mxu0 0.0
    %212 = vmatprep.subr.mxu0 0.0
    %213 = vmatpush1.msra.mxu0 0.0
    %214 = vmatprep.subr.mxu0 0.0
    %215 = vmatpush1.msra.mxu0 0.0
    %216 = vmatprep.subr.mxu0 0.0
    %217 = vmatpush1.msra.mxu0 0.0
    %218 = vmatprep.subr.mxu0 0.0
    %219 = vmatpush1.msra.mxu0 0.0
    %220 = vmatprep.subr.mxu0 0.0
    %221 = vmatpush1.msra.mxu0 0.0
    %222 = vmatprep.subr.mxu0 0.0
    %223 = vmatpush1.msra.mxu0 0.0
    %224 = vmatprep.subr.mxu0 0.0
    %225 = vmatpush1.msra.mxu0 0.0
    %226 = vmatprep.mubr.f32.mxu0 0.0
    %227 = vmatmul.mubr.f32.gmra.mrb[0].mxu0 %v145
    %v228 = vpop.f32.mrb[0].mxu0
    %v229 = vadd.f32 0.0, %v228
    %v230 = vpop.f32.mrb[0].mxu0
    %231 = vdwg.mxu0
    %v232 = vld [vmem:[%s4] sm:$0x1]
    %v234 = vlaneseq
    %v235 = vshrl.u32 %v234, 7
    %v236 = vsub.s32 0, %v235
    %v237 = vrot.slane %v232, %v236
    %v239 = vadd.f32 %v229, %v237
    %v240 = vmax.f32 %v239, 0.0
    %vm241 = vcmask 15360
    %242 = vst.msk [vmem:[%s5] sm:$0xff] %vm241, %v240
    // Predicated region
    $region34: #{tpu_custom_call.1} parent=1 // pred_check
      _
    $region35: #{tpu_custom_call.1} parent=1 // pred_check_branch
      %244 = sbr.rel (0) target = $region37
    $region36: #{tpu_custom_call.1} parent=1 // pred_region
      _
    $region37: #{tpu_custom_call.1} parent=1 // pred_fallthru
      _
    // Predicated region
    $region38: #{tpu_custom_call.1} parent=1 // pred_check
      _
    $region39: #{tpu_custom_call.1} parent=1 // pred_check_branch
      %246 = sbr.rel (0) target = $region41
    $region40: #{tpu_custom_call.1} parent=1 // pred_region
      _
    $region41: #{tpu_custom_call.1} parent=1 // pred_fallthru
      _
    %247 = vsyncpa [#allocation3], 1
    %248 = vsyncpa [#allocation5], 1

</llo_original>
